<compile_context>
chip_gen: v5e
topology: v5e:2x2
jax: 0.10.0
libtpu: 0.0.40
codegen_flags: <defaults>
</compile_context>

<pallas_src>
import numpy as np

import jax
import jax.numpy as jnp
from jax import lax
from jax.experimental import pallas as pl
from jax.experimental.pallas import tpu as pltpu


# ---------------------------------------------------------------------------
# Fused BasicBlock kernel (one grid step per batch *slice* of B images)
# ---------------------------------------------------------------------------

def _basic_block_kernel(x_ref, m1_ref, b1_ref, m2_ref, b2_ref, o_ref,
                        xpad_ref, midpad_ref):
    # x_ref   : (B, H, W*C)        bf16 input tile (also the residual source)
    # m1_ref  : (3, W*C, W*C)      bf16 banded conv1 weights (BN1 folded), one per kh
    # b1_ref  : (1, W*C)           f32 folded BN1 bias (replicated over W)
    # m2_ref  : (3, W*C, W*C)      bf16 banded conv2 weights (BN2 folded)
    # b2_ref  : (1, W*C)           f32 folded BN2 bias
    # o_ref   : (B, H, W*C)        bf16 output tile
    # xpad_ref, midpad_ref : (B*(H+2), W*C) bf16 VMEM slabs (per-image 1-row height halo)
    B, H, WC = o_ref.shape
    Hp = H + 2

    # Halo rows (slab rows b*Hp and b*Hp+H+1) must be zero.  NOTE: deliberately NOT
    # hoisted under pl.when(program_id == 0) — with the grid axis marked "parallel",
    # v7x shards steps across TensorCores, each with its own scratch, and only one core
    # ever sees program_id == 0.  A few single-row stores per step are negligible.
    zrow = jnp.zeros((1, WC), xpad_ref.dtype)
    for b in range(B):
        base = b * Hp
        xpad_ref[base:base + 1, :] = zrow
        xpad_ref[base + H + 1:base + H + 2, :] = zrow
        midpad_ref[base:base + 1, :] = zrow
        midpad_ref[base + H + 1:base + H + 2, :] = zrow

    # --- conv1 + bn1 + relu (width padding handled by the band structure of m1) -------
    for b in range(B):
        xpad_ref[b * Hp + 1:b * Hp + 1 + H, :] = x_ref[b]

    # One aligned (offset-0) full-slab read feeds all three kh matmuls; the kh row shift
    # is applied to the f32 results below, so Mosaic never materializes shifted bf16
    # operand copies in front of the MXU.
    xs = xpad_ref[...]                                      # (B*Hp, WC) bf16
    y0 = jnp.dot(xs, m1_ref[0], preferred_element_type=jnp.float32)
    y1 = jnp.dot(xs, m1_ref[1], preferred_element_type=jnp.float32)
    y2 = jnp.dot(xs, m1_ref[2], preferred_element_type=jnp.float32)

    for b in range(B):
        base = b * Hp
        acc1 = (y0[base:base + H]
                + y1[base + 1:base + 1 + H]
                + y2[base + 2:base + 2 + H])                # (H, WC) f32
        mid = jnp.maximum(acc1 + b1_ref[...], 0.0)
        midpad_ref[base + 1:base + 1 + H, :] = mid.astype(midpad_ref.dtype)

    # --- conv2 + bn2 + residual + relu (intermediate never leaves VMEM) ---------------
    ms = midpad_ref[...]                                    # (B*Hp, WC) bf16
    z0 = jnp.dot(ms, m2_ref[0], preferred_element_type=jnp.float32)
    z1 = jnp.dot(ms, m2_ref[1], preferred_element_type=jnp.float32)
    z2 = jnp.dot(ms, m2_ref[2], preferred_element_type=jnp.float32)

    for b in range(B):
        base = b * Hp
        acc2 = (z0[base:base + H]
                + z1[base + 1:base + 1 + H]
                + z2[base + 2:base + 2 + H])                # (H, WC) f32
        out = jnp.maximum(acc2 + b2_ref[...] + x_ref[b].astype(jnp.float32), 0.0)
        o_ref[b] = out.astype(o_ref.dtype)                  # lane-dense bf16 store


def basic_block_fused(x_flat, m1, b1, m2, b2, batch_per_step):
    """x_flat: (N, H, W*C) bf16; m*: (3, W*C, W*C) bf16; b*: (1, W*C) f32."""
    N, H, WC = x_flat.shape
    assert N % batch_per_step == 0
    B = batch_per_step
    G = N // B
    Hp = H + 2
    return pl.pallas_call(
        _basic_block_kernel,
        out_shape=jax.ShapeDtypeStruct((N, H, WC), jnp.bfloat16),
        grid_spec=pltpu.PrefetchScalarGridSpec(
            num_scalar_prefetch=0,
            grid=(G,),
            in_specs=[
                pl.BlockSpec((B, H, WC), lambda n: (n, 0, 0)),
                # TODO(synk): add pipeline_mode=pl.Buffered(1) on the never-changing
                #             weight blocks once WC is large enough for the double-buffer
                #             VMEM to matter (negligible at WC = 128).
                pl.BlockSpec((3, WC, WC), lambda n: (0, 0, 0)),
                pl.BlockSpec((1, WC), lambda n: (0, 0)),
                pl.BlockSpec((3, WC, WC), lambda n: (0, 0, 0)),
                pl.BlockSpec((1, WC), lambda n: (0, 0)),
            ],
            out_specs=pl.BlockSpec((B, H, WC), lambda n: (n, 0, 0)),
            scratch_shapes=[
                pltpu.VMEM((B * Hp, WC), jnp.bfloat16),   # padded input slab
                pltpu.VMEM((B * Hp, WC), jnp.bfloat16),   # padded conv1-output slab
            ],
        ),
        compiler_params=pltpu.CompilerParams(
            dimension_semantics=("parallel",)),
    )(x_flat, m1, b1, m2, b2)


# ---------------------------------------------------------------------------
# Parameter construction + BN folding + banded weight construction
# ---------------------------------------------------------------------------

def make_basicblock_params(key, inplanes, planes):
    ks = jax.random.split(key, 10)
    p = {}
    p["conv1_w"] = 0.1 * jax.random.normal(ks[0], (planes, inplanes, 3, 3), jnp.float32)
    p["conv2_w"] = 0.1 * jax.random.normal(ks[1], (planes, planes, 3, 3), jnp.float32)
    p["bn1_gamma"] = 1.0 + 0.1 * jax.random.normal(ks[2], (planes,), jnp.float32)
    p["bn1_beta"] = 0.1 * jax.random.normal(ks[3], (planes,), jnp.float32)
    p["bn1_mean"] = 0.1 * jax.random.normal(ks[4], (planes,), jnp.float32)
    p["bn1_var"] = jnp.abs(jax.random.normal(ks[5], (planes,), jnp.float32)) + 0.5
    p["bn2_gamma"] = 1.0 + 0.1 * jax.random.normal(ks[6], (planes,), jnp.float32)
    p["bn2_beta"] = 0.1 * jax.random.normal(ks[7], (planes,), jnp.float32)
    p["bn2_mean"] = 0.1 * jax.random.normal(ks[8], (planes,), jnp.float32)
    p["bn2_var"] = jnp.abs(jax.random.normal(ks[9], (planes,), jnp.float32)) + 0.5
    return p


def fold_bn(w_oihw, gamma, beta, mean, var, eps=1e-5):
    """Fold eval-mode BN into conv weight/bias. Returns (w_hwio f32, bias f32)."""
    scale = gamma / jnp.sqrt(var + eps)
    w_folded = w_oihw * scale[:, None, None, None]
    bias = beta - mean * scale
    return jnp.transpose(w_folded, (2, 3, 1, 0)), bias     # OIHW -> HWIO


def build_banded_weight(w_hwio, W):
    """(3,3,Cin,Cout) conv weight -> (3, W*Cin, W*Cout) banded matrices, one per kh.

    M[kh, w_in*Cin + ci, w_out*Cout + co] = w[kh, w_in - w_out + 1, ci, co] inside the
    band, 0 outside.  The band also implements the width zero-padding, so the kernel
    never needs padded columns.
    """
    _, _, Cin, Cout = w_hwio.shape
    sel = np.zeros((3, W, W), np.float32)
    for kw in range(3):
        for w_out in range(W):
            w_in = w_out + kw - 1
            if 0 <= w_in < W:
                sel[kw, w_in, w_out] = 1.0
    M = jnp.einsum("kuw,hkio->huiwo", jnp.asarray(sel), w_hwio)
    return M.reshape(3, W * Cin, W * Cout)


# ---------------------------------------------------------------------------
# BasicBlock forward (stride=1, downsample=None) — PyTorch-facing NCHW wrapper
# ---------------------------------------------------------------------------

def basic_block_forward(x_nchw, params):
    N, C, H, W = x_nchw.shape
    cout, cin, _, _ = params["conv1_w"].shape
    # Identity residual (downsample=None) + square banded matrices require equal planes.
    assert cin == C and cout == C, "identity residual path requires inplanes == planes"
    assert (W * C) % 128 == 0, "width-in-lanes layout needs W*C to be a multiple of 128"

    # NCHW -> NHWC -> (N, H, W*C).  In a full network this transpose happens once at
    # model I/O; here we keep the PyTorch-facing NCHW signature.
    x = jnp.transpose(x_nchw, (0, 2, 3, 1)).reshape(N, H, W * C)

    w1, b1 = fold_bn(params["conv1_w"], params["bn1_gamma"], params["bn1_beta"],
                     params["bn1_mean"], params["bn1_var"])
    w2, b2 = fold_bn(params["conv2_w"], params["bn2_gamma"], params["bn2_beta"],
                     params["bn2_mean"], params["bn2_var"])

    m1 = build_banded_weight(w1, W).astype(jnp.bfloat16)
    m2 = build_banded_weight(w2, W).astype(jnp.bfloat16)
    b1f = jnp.tile(b1, W).reshape(1, W * C)      # f32, replicated per output column
    b2f = jnp.tile(b2, W).reshape(1, W * C)

    # Two parallel grid steps when possible (keeps both v7x TensorCores busy while
    # amortizing per-step overhead); otherwise everything in one step.
    batch_per_step = N // 2 if (N % 2 == 0 and N >= 2) else N

    out = basic_block_fused(x.astype(jnp.bfloat16), m1, b1f, m2, b2f, batch_per_step)

    # bf16 NCHW output (next block consumes bf16; halves the transpose traffic).
    return jnp.transpose(out.reshape(N, H, W, C), (0, 3, 1, 2))


# ---------------------------------------------------------------------------
# Pure-JAX reference (same bf16 operand / f32 accumulation convention)
# ---------------------------------------------------------------------------

def basic_block_reference(x_nchw, params):
    x = jnp.transpose(x_nchw, (0, 2, 3, 1))
    w1, b1 = fold_bn(params["conv1_w"], params["bn1_gamma"], params["bn1_beta"],
                     params["bn1_mean"], params["bn1_var"])
    w2, b2 = fold_bn(params["conv2_w"], params["bn2_gamma"], params["bn2_beta"],
                     params["bn2_mean"], params["bn2_var"])

    def conv(inp_bf, w_bf):
        return lax.conv_general_dilated(
            inp_bf, w_bf, window_strides=(1, 1), padding=((1, 1), (1, 1)),
            dimension_numbers=("NHWC", "HWIO", "NHWC"),
            preferred_element_type=jnp.float32)

    xb = x.astype(jnp.bfloat16)
    mid = jnp.maximum(conv(xb, w1.astype(jnp.bfloat16)) + b1[None, None, None, :], 0.0)
    out = jnp.maximum(conv(mid.astype(jnp.bfloat16), w2.astype(jnp.bfloat16))
                      + b2[None, None, None, :] + xb.astype(jnp.float32), 0.0)
    return jnp.transpose(out, (0, 3, 1, 2))


if __name__ == "__main__":
    key = jax.random.PRNGKey(0)
    k_x, k_p = jax.random.split(key)

    # inplanes = planes = 8, stride = 1, downsample = None;  W*C = 128 (lane-dense)
    N, C, H, W = 4, 8, 16, 16
    x = jax.random.normal(k_x, (N, C, H, W), jnp.float32)   # NCHW, like PyTorch
    params = make_basicblock_params(k_p, inplanes=C, planes=C)

    out = jax.block_until_ready(basic_block_forward(x, params))
    ref = jax.block_until_ready(basic_block_reference(x, params))

    assert out.shape == (N, C, H, W)
    max_err = float(jnp.max(jnp.abs(out.astype(jnp.float32) - ref)))
    # bf16 MXU operands (f32 accumulation) + bf16-rounded final output: allow
    # bf16-level disagreement against the f32-output reference.
    assert max_err < 5e-2, f"mismatch vs reference: {max_err}"

    print("KERNEL_OK")
</pallas_src>

<mosaic_0001>
module attributes {stable_mosaic.version = 11 : i64} {
  func.func @_basic_block_kernel(%arg0: i32, %arg1: memref<2x16x128xbf16, #tpu.memory_space<vmem>>, %arg2: memref<3x128x128xbf16, #tpu.memory_space<vmem>>, %arg3: memref<1x128xf32, #tpu.memory_space<vmem>>, %arg4: memref<3x128x128xbf16, #tpu.memory_space<vmem>>, %arg5: memref<1x128xf32, #tpu.memory_space<vmem>>, %arg6: memref<2x16x128xbf16, #tpu.memory_space<vmem>>, %arg7: memref<36x128xbf16, #tpu.memory_space<vmem>>, %arg8: memref<36x128xbf16, #tpu.memory_space<vmem>>) attributes {dimension_semantics = [#tpu.dimension_semantics<parallel>], iteration_bounds = array<i64: 2>, scalar_prefetch = 0 : i64, scratch_operands = 2 : i64, tpu.core_type = #tpu.core_type<tc>, window_params = [{transform_indices = @transform_0, window_bounds = array<i64: 2, 16, 128>}, {pipeline_mode = #tpu.pipeline_mode<synchronous>, transform_indices = @transform_1, window_bounds = array<i64: 3, 128, 128>}, {pipeline_mode = #tpu.pipeline_mode<synchronous>, transform_indices = @transform_2, window_bounds = array<i64: 1, 128>}, {pipeline_mode = #tpu.pipeline_mode<synchronous>, transform_indices = @transform_3, window_bounds = array<i64: 3, 128, 128>}, {pipeline_mode = #tpu.pipeline_mode<synchronous>, transform_indices = @transform_4, window_bounds = array<i64: 1, 128>}, {transform_indices = @transform_5, window_bounds = array<i64: 2, 16, 128>}]} {
    %cst = arith.constant 0.000000e+00 : bf16
    %0 = vector.broadcast %cst : bf16 to vector<1x128xbf16>
    %c0 = arith.constant 0 : index
    %c0_0 = arith.constant 0 : index
    %1 = vector.load %arg7[%c0, %c0_0] : memref<36x128xbf16, #tpu.memory_space<vmem>>, vector<1x128xbf16>
    tpu.vector_store %arg7[%c0, %c0_0], %0 {strides = array<i32>} : memref<36x128xbf16, #tpu.memory_space<vmem>>, vector<1x128xbf16>,
    %c17 = arith.constant 17 : index
    %c0_1 = arith.constant 0 : index
    %2 = vector.load %arg7[%c17, %c0_1] : memref<36x128xbf16, #tpu.memory_space<vmem>>, vector<1x128xbf16>
    tpu.vector_store %arg7[%c17, %c0_1], %0 {strides = array<i32>} : memref<36x128xbf16, #tpu.memory_space<vmem>>, vector<1x128xbf16>,
    %c0_2 = arith.constant 0 : index
    %c0_3 = arith.constant 0 : index
    %3 = vector.load %arg8[%c0_2, %c0_3] : memref<36x128xbf16, #tpu.memory_space<vmem>>, vector<1x128xbf16>
    tpu.vector_store %arg8[%c0_2, %c0_3], %0 {strides = array<i32>} : memref<36x128xbf16, #tpu.memory_space<vmem>>, vector<1x128xbf16>,
    %c17_4 = arith.constant 17 : index
    %c0_5 = arith.constant 0 : index
    %4 = vector.load %arg8[%c17_4, %c0_5] : memref<36x128xbf16, #tpu.memory_space<vmem>>, vector<1x128xbf16>
    tpu.vector_store %arg8[%c17_4, %c0_5], %0 {strides = array<i32>} : memref<36x128xbf16, #tpu.memory_space<vmem>>, vector<1x128xbf16>,
    %c18 = arith.constant 18 : index
    %c0_6 = arith.constant 0 : index
    %5 = vector.load %arg7[%c18, %c0_6] : memref<36x128xbf16, #tpu.memory_space<vmem>>, vector<1x128xbf16>
    tpu.vector_store %arg7[%c18, %c0_6], %0 {strides = array<i32>} : memref<36x128xbf16, #tpu.memory_space<vmem>>, vector<1x128xbf16>,
    %c35 = arith.constant 35 : index
    %c0_7 = arith.constant 0 : index
    %6 = vector.load %arg7[%c35, %c0_7] : memref<36x128xbf16, #tpu.memory_space<vmem>>, vector<1x128xbf16>
    tpu.vector_store %arg7[%c35, %c0_7], %0 {strides = array<i32>} : memref<36x128xbf16, #tpu.memory_space<vmem>>, vector<1x128xbf16>,
    %c18_8 = arith.constant 18 : index
    %c0_9 = arith.constant 0 : index
    %7 = vector.load %arg8[%c18_8, %c0_9] : memref<36x128xbf16, #tpu.memory_space<vmem>>, vector<1x128xbf16>
    tpu.vector_store %arg8[%c18_8, %c0_9], %0 {strides = array<i32>} : memref<36x128xbf16, #tpu.memory_space<vmem>>, vector<1x128xbf16>,
    %c35_10 = arith.constant 35 : index
    %c0_11 = arith.constant 0 : index
    %8 = vector.load %arg8[%c35_10, %c0_11] : memref<36x128xbf16, #tpu.memory_space<vmem>>, vector<1x128xbf16>
    tpu.vector_store %arg8[%c35_10, %c0_11], %0 {strides = array<i32>} : memref<36x128xbf16, #tpu.memory_space<vmem>>, vector<1x128xbf16>,
    %c0_12 = arith.constant 0 : index
    %c0_13 = arith.constant 0 : index
    %c0_14 = arith.constant 0 : index
    %9 = vector.load %arg1[%c0_12, %c0_13, %c0_14] : memref<2x16x128xbf16, #tpu.memory_space<vmem>>, vector<1x16x128xbf16>
    %10 = vector.shape_cast %9 : vector<1x16x128xbf16> to vector<16x128xbf16>
    %c1 = arith.constant 1 : index
    %c0_15 = arith.constant 0 : index
    %11 = vector.load %arg7[%c1, %c0_15] : memref<36x128xbf16, #tpu.memory_space<vmem>>, vector<16x128xbf16>
    tpu.vector_store %arg7[%c1, %c0_15], %10 {strides = array<i32>} : memref<36x128xbf16, #tpu.memory_space<vmem>>, vector<16x128xbf16>,
    %c1_16 = arith.constant 1 : index
    %c0_17 = arith.constant 0 : index
    %c0_18 = arith.constant 0 : index
    %12 = vector.load %arg1[%c1_16, %c0_17, %c0_18] : memref<2x16x128xbf16, #tpu.memory_space<vmem>>, vector<1x16x128xbf16>
    %13 = vector.shape_cast %12 : vector<1x16x128xbf16> to vector<16x128xbf16>
    %c19 = arith.constant 19 : index
    %c0_19 = arith.constant 0 : index
    %14 = vector.load %arg7[%c19, %c0_19] : memref<36x128xbf16, #tpu.memory_space<vmem>>, vector<16x128xbf16>
    tpu.vector_store %arg7[%c19, %c0_19], %13 {strides = array<i32>} : memref<36x128xbf16, #tpu.memory_space<vmem>>, vector<16x128xbf16>,
    %c0_20 = arith.constant 0 : index
    %c0_21 = arith.constant 0 : index
    %15 = vector.load %arg7[%c0_20, %c0_21] : memref<36x128xbf16, #tpu.memory_space<vmem>>, vector<36x128xbf16>
    %c0_22 = arith.constant 0 : index
    %c0_23 = arith.constant 0 : index
    %c0_24 = arith.constant 0 : index
    %16 = vector.load %arg2[%c0_22, %c0_23, %c0_24] : memref<3x128x128xbf16, #tpu.memory_space<vmem>>, vector<1x128x128xbf16>
    %17 = vector.shape_cast %16 : vector<1x128x128xbf16> to vector<128x128xbf16>
    %cst_25 = arith.constant dense<0.000000e+00> : vector<36x128xf32>
    %18 = tpu.matmul %15, %17, %cst_25 {dimension_numbers = #tpu.dot_dimension_numbers<[1], [0], [0], [1], [0, 0, 1, 1], [], []>} : vector<36x128xbf16>, vector<128x128xbf16>, vector<36x128xf32> -> vector<36x128xf32>
    %c1_26 = arith.constant 1 : index
    %c0_27 = arith.constant 0 : index
    %c0_28 = arith.constant 0 : index
    %19 = vector.load %arg2[%c1_26, %c0_27, %c0_28] : memref<3x128x128xbf16, #tpu.memory_space<vmem>>, vector<1x128x128xbf16>
    %20 = vector.shape_cast %19 : vector<1x128x128xbf16> to vector<128x128xbf16>
    %cst_29 = arith.constant dense<0.000000e+00> : vector<36x128xf32>
    %21 = tpu.matmul %15, %20, %cst_29 {dimension_numbers = #tpu.dot_dimension_numbers<[1], [0], [0], [1], [0, 0, 1, 1], [], []>} : vector<36x128xbf16>, vector<128x128xbf16>, vector<36x128xf32> -> vector<36x128xf32>
    %c2 = arith.constant 2 : index
    %c0_30 = arith.constant 0 : index
    %c0_31 = arith.constant 0 : index
    %22 = vector.load %arg2[%c2, %c0_30, %c0_31] : memref<3x128x128xbf16, #tpu.memory_space<vmem>>, vector<1x128x128xbf16>
    %23 = vector.shape_cast %22 : vector<1x128x128xbf16> to vector<128x128xbf16>
    %cst_32 = arith.constant dense<0.000000e+00> : vector<36x128xf32>
    %24 = tpu.matmul %15, %23, %cst_32 {dimension_numbers = #tpu.dot_dimension_numbers<[1], [0], [0], [1], [0, 0, 1, 1], [], []>} : vector<36x128xbf16>, vector<128x128xbf16>, vector<36x128xf32> -> vector<36x128xf32>
    %25 = vector.extract_strided_slice %18 {offsets = [0, 0], sizes = [16, 128], strides = [1, 1]} : vector<36x128xf32> to vector<16x128xf32>
    %26 = vector.extract_strided_slice %21 {offsets = [1, 0], sizes = [16, 128], strides = [1, 1]} : vector<36x128xf32> to vector<16x128xf32>
    %27 = arith.addf %25, %26 : vector<16x128xf32>
    %28 = vector.extract_strided_slice %24 {offsets = [2, 0], sizes = [16, 128], strides = [1, 1]} : vector<36x128xf32> to vector<16x128xf32>
    %29 = arith.addf %27, %28 : vector<16x128xf32>
    %c0_33 = arith.constant 0 : index
    %c0_34 = arith.constant 0 : index
    %30 = vector.load %arg3[%c0_33, %c0_34] : memref<1x128xf32, #tpu.memory_space<vmem>>, vector<1x128xf32>
    %31 = vector.broadcast %30 : vector<1x128xf32> to vector<16x128xf32>
    %32 = arith.addf %29, %31 : vector<16x128xf32>
    %cst_35 = arith.constant 0.000000e+00 : f32
    %33 = vector.broadcast %cst_35 : f32 to vector<16x128xf32>
    %34 = arith.maximumf %32, %33 : vector<16x128xf32>
    %35 = arith.truncf %34 : vector<16x128xf32> to vector<16x128xbf16>
    %c1_36 = arith.constant 1 : index
    %c0_37 = arith.constant 0 : index
    %36 = vector.load %arg8[%c1_36, %c0_37] : memref<36x128xbf16, #tpu.memory_space<vmem>>, vector<16x128xbf16>
    tpu.vector_store %arg8[%c1_36, %c0_37], %35 {strides = array<i32>} : memref<36x128xbf16, #tpu.memory_space<vmem>>, vector<16x128xbf16>,
    %37 = vector.extract_strided_slice %18 {offsets = [18, 0], sizes = [16, 128], strides = [1, 1]} : vector<36x128xf32> to vector<16x128xf32>
    %38 = vector.extract_strided_slice %21 {offsets = [19, 0], sizes = [16, 128], strides = [1, 1]} : vector<36x128xf32> to vector<16x128xf32>
    %39 = arith.addf %37, %38 : vector<16x128xf32>
    %40 = vector.extract_strided_slice %24 {offsets = [20, 0], sizes = [16, 128], strides = [1, 1]} : vector<36x128xf32> to vector<16x128xf32>
    %41 = arith.addf %39, %40 : vector<16x128xf32>
    %c0_38 = arith.constant 0 : index
    %c0_39 = arith.constant 0 : index
    %42 = vector.load %arg3[%c0_38, %c0_39] : memref<1x128xf32, #tpu.memory_space<vmem>>, vector<1x128xf32>
    %43 = vector.broadcast %42 : vector<1x128xf32> to vector<16x128xf32>
    %44 = arith.addf %41, %43 : vector<16x128xf32>
    %cst_40 = arith.constant 0.000000e+00 : f32
    %45 = vector.broadcast %cst_40 : f32 to vector<16x128xf32>
    %46 = arith.maximumf %44, %45 : vector<16x128xf32>
    %47 = arith.truncf %46 : vector<16x128xf32> to vector<16x128xbf16>
    %c19_41 = arith.constant 19 : index
    %c0_42 = arith.constant 0 : index
    %48 = vector.load %arg8[%c19_41, %c0_42] : memref<36x128xbf16, #tpu.memory_space<vmem>>, vector<16x128xbf16>
    tpu.vector_store %arg8[%c19_41, %c0_42], %47 {strides = array<i32>} : memref<36x128xbf16, #tpu.memory_space<vmem>>, vector<16x128xbf16>,
    %c0_43 = arith.constant 0 : index
    %c0_44 = arith.constant 0 : index
    %49 = vector.load %arg8[%c0_43, %c0_44] : memref<36x128xbf16, #tpu.memory_space<vmem>>, vector<36x128xbf16>
    %c0_45 = arith.constant 0 : index
    %c0_46 = arith.constant 0 : index
    %c0_47 = arith.constant 0 : index
    %50 = vector.load %arg4[%c0_45, %c0_46, %c0_47] : memref<3x128x128xbf16, #tpu.memory_space<vmem>>, vector<1x128x128xbf16>
    %51 = vector.shape_cast %50 : vector<1x128x128xbf16> to vector<128x128xbf16>
    %cst_48 = arith.constant dense<0.000000e+00> : vector<36x128xf32>
    %52 = tpu.matmul %49, %51, %cst_48 {dimension_numbers = #tpu.dot_dimension_numbers<[1], [0], [0], [1], [0, 0, 1, 1], [], []>} : vector<36x128xbf16>, vector<128x128xbf16>, vector<36x128xf32> -> vector<36x128xf32>
    %c1_49 = arith.constant 1 : index
    %c0_50 = arith.constant 0 : index
    %c0_51 = arith.constant 0 : index
    %53 = vector.load %arg4[%c1_49, %c0_50, %c0_51] : memref<3x128x128xbf16, #tpu.memory_space<vmem>>, vector<1x128x128xbf16>
    %54 = vector.shape_cast %53 : vector<1x128x128xbf16> to vector<128x128xbf16>
    %cst_52 = arith.constant dense<0.000000e+00> : vector<36x128xf32>
    %55 = tpu.matmul %49, %54, %cst_52 {dimension_numbers = #tpu.dot_dimension_numbers<[1], [0], [0], [1], [0, 0, 1, 1], [], []>} : vector<36x128xbf16>, vector<128x128xbf16>, vector<36x128xf32> -> vector<36x128xf32>
    %c2_53 = arith.constant 2 : index
    %c0_54 = arith.constant 0 : index
    %c0_55 = arith.constant 0 : index
    %56 = vector.load %arg4[%c2_53, %c0_54, %c0_55] : memref<3x128x128xbf16, #tpu.memory_space<vmem>>, vector<1x128x128xbf16>
    %57 = vector.shape_cast %56 : vector<1x128x128xbf16> to vector<128x128xbf16>
    %cst_56 = arith.constant dense<0.000000e+00> : vector<36x128xf32>
    %58 = tpu.matmul %49, %57, %cst_56 {dimension_numbers = #tpu.dot_dimension_numbers<[1], [0], [0], [1], [0, 0, 1, 1], [], []>} : vector<36x128xbf16>, vector<128x128xbf16>, vector<36x128xf32> -> vector<36x128xf32>
    %59 = vector.extract_strided_slice %52 {offsets = [0, 0], sizes = [16, 128], strides = [1, 1]} : vector<36x128xf32> to vector<16x128xf32>
    %60 = vector.extract_strided_slice %55 {offsets = [1, 0], sizes = [16, 128], strides = [1, 1]} : vector<36x128xf32> to vector<16x128xf32>
    %61 = arith.addf %59, %60 : vector<16x128xf32>
    %62 = vector.extract_strided_slice %58 {offsets = [2, 0], sizes = [16, 128], strides = [1, 1]} : vector<36x128xf32> to vector<16x128xf32>
    %63 = arith.addf %61, %62 : vector<16x128xf32>
    %c0_57 = arith.constant 0 : index
    %c0_58 = arith.constant 0 : index
    %64 = vector.load %arg5[%c0_57, %c0_58] : memref<1x128xf32, #tpu.memory_space<vmem>>, vector<1x128xf32>
    %65 = vector.broadcast %64 : vector<1x128xf32> to vector<16x128xf32>
    %66 = arith.addf %63, %65 : vector<16x128xf32>
    %c0_59 = arith.constant 0 : index
    %c0_60 = arith.constant 0 : index
    %c0_61 = arith.constant 0 : index
    %67 = vector.load %arg1[%c0_59, %c0_60, %c0_61] : memref<2x16x128xbf16, #tpu.memory_space<vmem>>, vector<1x16x128xbf16>
    %68 = vector.shape_cast %67 : vector<1x16x128xbf16> to vector<16x128xbf16>
    %69 = arith.extf %68 : vector<16x128xbf16> to vector<16x128xf32>
    %70 = arith.addf %66, %69 : vector<16x128xf32>
    %cst_62 = arith.constant 0.000000e+00 : f32
    %71 = vector.broadcast %cst_62 : f32 to vector<16x128xf32>
    %72 = arith.maximumf %70, %71 : vector<16x128xf32>
    %73 = arith.truncf %72 : vector<16x128xf32> to vector<16x128xbf16>
    %c0_63 = arith.constant 0 : index
    %c0_64 = arith.constant 0 : index
    %c0_65 = arith.constant 0 : index
    %74 = vector.load %arg6[%c0_63, %c0_64, %c0_65] : memref<2x16x128xbf16, #tpu.memory_space<vmem>>, vector<1x16x128xbf16>
    %75 = vector.shape_cast %74 : vector<1x16x128xbf16> to vector<16x128xbf16>
    %76 = vector.shape_cast %73 : vector<16x128xbf16> to vector<1x16x128xbf16>
    tpu.vector_store %arg6[%c0_63, %c0_64, %c0_65], %76 {strides = array<i32>} : memref<2x16x128xbf16, #tpu.memory_space<vmem>>, vector<1x16x128xbf16>,
    %77 = vector.extract_strided_slice %52 {offsets = [18, 0], sizes = [16, 128], strides = [1, 1]} : vector<36x128xf32> to vector<16x128xf32>
    %78 = vector.extract_strided_slice %55 {offsets = [19, 0], sizes = [16, 128], strides = [1, 1]} : vector<36x128xf32> to vector<16x128xf32>
    %79 = arith.addf %77, %78 : vector<16x128xf32>
    %80 = vector.extract_strided_slice %58 {offsets = [20, 0], sizes = [16, 128], strides = [1, 1]} : vector<36x128xf32> to vector<16x128xf32>
    %81 = arith.addf %79, %80 : vector<16x128xf32>
    %c0_66 = arith.constant 0 : index
    %c0_67 = arith.constant 0 : index
    %82 = vector.load %arg5[%c0_66, %c0_67] : memref<1x128xf32, #tpu.memory_space<vmem>>, vector<1x128xf32>
    %83 = vector.broadcast %82 : vector<1x128xf32> to vector<16x128xf32>
    %84 = arith.addf %81, %83 : vector<16x128xf32>
    %c1_68 = arith.constant 1 : index
    %c0_69 = arith.constant 0 : index
    %c0_70 = arith.constant 0 : index
    %85 = vector.load %arg1[%c1_68, %c0_69, %c0_70] : memref<2x16x128xbf16, #tpu.memory_space<vmem>>, vector<1x16x128xbf16>
    %86 = vector.shape_cast %85 : vector<1x16x128xbf16> to vector<16x128xbf16>
    %87 = arith.extf %86 : vector<16x128xbf16> to vector<16x128xf32>
    %88 = arith.addf %84, %87 : vector<16x128xf32>
    %cst_71 = arith.constant 0.000000e+00 : f32
    %89 = vector.broadcast %cst_71 : f32 to vector<16x128xf32>
    %90 = arith.maximumf %88, %89 : vector<16x128xf32>
    %91 = arith.truncf %90 : vector<16x128xf32> to vector<16x128xbf16>
    %c1_72 = arith.constant 1 : index
    %c0_73 = arith.constant 0 : index
    %c0_74 = arith.constant 0 : index
    %92 = vector.load %arg6[%c1_72, %c0_73, %c0_74] : memref<2x16x128xbf16, #tpu.memory_space<vmem>>, vector<1x16x128xbf16>
    %93 = vector.shape_cast %92 : vector<1x16x128xbf16> to vector<16x128xbf16>
    %94 = vector.shape_cast %91 : vector<16x128xbf16> to vector<1x16x128xbf16>
    tpu.vector_store %arg6[%c1_72, %c0_73, %c0_74], %94 {strides = array<i32>} : memref<2x16x128xbf16, #tpu.memory_space<vmem>>, vector<1x16x128xbf16>,
    return
  }
  func.func @transform_0(%arg0: i32) -> (i32, i32, i32) {
    %c0_i32 = arith.constant 0 : i32
    %c0_i32_0 = arith.constant 0 : i32
    %c0_i32_1 = arith.constant 0 : i32
    return %arg0, %c0_i32, %c0_i32_0 : i32, i32, i32
  }
  func.func @transform_1(%arg0: i32) -> (i32, i32, i32) {
    %c0_i32 = arith.constant 0 : i32
    %c0_i32_0 = arith.constant 0 : i32
    %c0_i32_1 = arith.constant 0 : i32
    %c0_i32_2 = arith.constant 0 : i32
    return %c0_i32, %c0_i32_0, %c0_i32_1 : i32, i32, i32
  }
  func.func @transform_2(%arg0: i32) -> (i32, i32) {
    %c0_i32 = arith.constant 0 : i32
    %c0_i32_0 = arith.constant 0 : i32
    %c0_i32_1 = arith.constant 0 : i32
    return %c0_i32, %c0_i32_0 : i32, i32
  }
  func.func @transform_3(%arg0: i32) -> (i32, i32, i32) {
    %c0_i32 = arith.constant 0 : i32
    %c0_i32_0 = arith.constant 0 : i32
    %c0_i32_1 = arith.constant 0 : i32
    %c0_i32_2 = arith.constant 0 : i32
    return %c0_i32, %c0_i32_0, %c0_i32_1 : i32, i32, i32
  }
  func.func @transform_4(%arg0: i32) -> (i32, i32) {
    %c0_i32 = arith.constant 0 : i32
    %c0_i32_0 = arith.constant 0 : i32
    %c0_i32_1 = arith.constant 0 : i32
    return %c0_i32, %c0_i32_0 : i32, i32
  }
  func.func @transform_5(%arg0: i32) -> (i32, i32, i32) {
    %c0_i32 = arith.constant 0 : i32
    %c0_i32_0 = arith.constant 0 : i32
    %c0_i32_1 = arith.constant 0 : i32
    return %arg0, %c0_i32, %c0_i32_0 : i32, i32, i32
  }
}

</mosaic_0001>

<llo_original>
// kernel: tpu_custom_call.1
$region0: #{tpu_custom_call.1}
  #allocation0 [shape = 'u32[]', space=smem, size = 0x4, offset = 0x4, fixed_abs, tag = 'smem constant byte address 0x4 - core index']
  #allocation1 [shape = 'u32[72,128]{1,0:T(1,128)}', space=vmem, size = 0x9000, scoped, tag = 'internal scratch']
  #allocation2 [shape = 'bf16[36,128]{1,0:T(8,128)(2,1)}', space=vmem, size = 0x2800, scoped, tag = 'scratch operand']
  #allocation3 [shape = 'bf16[36,128]{1,0:T(8,128)(2,1)}', space=vmem, size = 0x2800, scoped, tag = 'scratch operand']
  %s0 = inlined_call_operand.hbm [shape: bf16[4,16,128], index: 0, kind: input, shape index: {}]
  %s1 = inlined_call_operand.hbm [shape: bf16[3,128,128], index: 1, kind: input, shape index: {}]
  %s2 = inlined_call_operand.vmem [shape: f32[1,128], index: 2, kind: input, shape index: {}]
  %s3 = inlined_call_operand.hbm [shape: bf16[3,128,128], index: 3, kind: input, shape index: {}]
  %s4 = inlined_call_operand.vmem [shape: f32[1,128], index: 4, kind: input, shape index: {}]
  %s5 = inlined_call_operand.hbm [shape: bf16[4,16,128], index: 5, kind: output, shape index: {}]
  %s6 = sld [smem:[#allocation0]]
  $region65: #{tpu_custom_call.1} parent=0
    _
  %s8 = ssub.s32 1, %s6
  %s9 = scalar_select 0, %s8, %s6
  $region1: #{tpu_custom_call.1} parent=0
    #allocation4 [shape = 'u8[16384]{0}', space=vmem, size = 0x4000, scoped, tag = 'input window, operand 0']
    #allocation5 [shape = 's32[2]{0}', space=sflag, size = 0x8, scoped, tag = 'scoped memory for tpu_custom_call.1']
    #allocation6 [shape = 's32[2]{0}', space=sflag, size = 0x8, scoped, tag = 'scoped memory for tpu_custom_call.1']
    #allocation7 [shape = 'u8[98304]{0}', space=vmem, size = 0x18000, scoped, tag = 'input window, operand 1, single buffered']
    #allocation8 [shape = 's32[1]{0}', space=sflag, size = 0x4, scoped, tag = 'scoped memory for tpu_custom_call.1']
    #allocation9 [shape = 'u8[98304]{0}', space=vmem, size = 0x18000, scoped, tag = 'input window, operand 3, single buffered']
    #allocation10 [shape = 'u8[16384]{0}', space=vmem, size = 0x4000, scoped, tag = 'output window, operand 0']
    %10 = vsyncpa [#allocation5], 0
    %s11 = scalar_lea.sflag [#allocation5], 1
    %12 = vsyncpa %s11, 0
    %13 = vsyncpa [#allocation8], 0
    %14 = vsyncpa [#allocation6], 0
    %s15 = scalar_lea.sflag [#allocation6], 1
    %16 = vsyncpa %s15, 0
    loop: start=0, step=1, limit=4
    $region2: #{tpu_custom_call.1} parent=1 // loop_pre_header
      _
    $region3: #{tpu_custom_call.1} parent=1 // loop_header
      %s18 = sphi 0, %s22
      %p19 = scmp.ge.s32.totalorder %s18, 4
      %s28 = sphi 0, %s30
      %s31 = sphi 0, %s28
      %s32 = sphi 0, %s31
      %s48 = sphi 0, %s32
      %s52 = sphi 0, %s52
      %s54 = sphi 0, %s52
      %s55 = sphi 0, %s54
      %s69 = sphi 0, %s55
      %s73 = sphi 0, %s73
      %s75 = sphi 0, %s73
      %s76 = sphi 0, %s75
      %s90 = sphi 0, %s76
      %s94 = sphi 0, %s94
      %s96 = sphi 0, %s94
      %s97 = sphi 0, %s96
      %s111 = sphi 0, %s97
      %s115 = sphi 0, %s115
      %s117 = sphi 0, %s115
      %s118 = sphi 0, %s117
      %s132 = sphi 0, %s118
      %s138 = sphi 0, %s140
      %s141 = sphi 0, %s138
      %s142 = sphi 0, %s141
      %s158 = sphi 0, %s142
    $region4: #{tpu_custom_call.1} parent=1 // loop_header_branch
      %21 = sbr.rel (%p19) target = $region8
    $region5: #{tpu_custom_call.1} parent=1 // loop_body
      %s23 = ssub.s32 %s18, 1
      %s24 = ssub.s32 %s18, 2
      %s25 = sadd.s32 %s18, 1
      %s26 = ssub.s32 %s18, %s25
      %p27 = scmp.eq.s32.totalorder %s26, 0
      %s29 = sadd.s32 %s28, 1
      %s30 = scalar_select %p27, %s28, %s29
      %p33 = pneg %p27
      %p34 = scmp.eq.s32.totalorder %s18, 1
      %p35 = por %p33, %p34
      %p36 = scmp.ne.s32.totalorder %s28, %s31
      %p37 = scmp.eq.s32.totalorder %s18, 0
      %p38 = por %p36, %p37
      %p39 = scmp.ne.s32.totalorder %s28, %s31
      %p40 = scmp.eq.s32.totalorder %s23, 1
      %p41 = por %p39, %p40
      %p42 = scmp.ne.s32.totalorder %s31, %s32
      %p43 = scmp.eq.s32.totalorder %s23, 0
      %p44 = por %p42, %p43
      %p45 = scmp.ne.s32.totalorder %s31, %s32
      %p46 = scmp.eq.s32.totalorder %s24, 1
      %p47 = por %p45, %p46
      %p49 = scmp.ne.s32.totalorder %s32, %s48
      %p50 = scmp.eq.s32.totalorder %s24, 0
      %p51 = por %p49, %p50
      %s53 = sadd.s32 %s52, 1
      %p56 = scmp.eq.s32.totalorder %s18, 1
      %p57 = scmp.ne.s32.totalorder %s52, %s54
      %p58 = scmp.eq.s32.totalorder %s18, 0
      %p59 = por %p57, %p58
      %p60 = scmp.ne.s32.totalorder %s52, %s54
      %p61 = scmp.eq.s32.totalorder %s23, 1
      %p62 = por %p60, %p61
      %p63 = scmp.ne.s32.totalorder %s54, %s55
      %p64 = scmp.eq.s32.totalorder %s23, 0
      %p65 = por %p63, %p64
      %p66 = scmp.ne.s32.totalorder %s54, %s55
      %p67 = scmp.eq.s32.totalorder %s24, 1
      %p68 = por %p66, %p67
      %p70 = scmp.ne.s32.totalorder %s55, %s69
      %p71 = scmp.eq.s32.totalorder %s24, 0
      %p72 = por %p70, %p71
      %s74 = sadd.s32 %s73, 1
      %p77 = scmp.eq.s32.totalorder %s18, 1
      %p78 = scmp.ne.s32.totalorder %s73, %s75
      %p79 = scmp.eq.s32.totalorder %s18, 0
      %p80 = por %p78, %p79
      %p81 = scmp.ne.s32.totalorder %s73, %s75
      %p82 = scmp.eq.s32.totalorder %s23, 1
      %p83 = por %p81, %p82
      %p84 = scmp.ne.s32.totalorder %s75, %s76
      %p85 = scmp.eq.s32.totalorder %s23, 0
      %p86 = por %p84, %p85
      %p87 = scmp.ne.s32.totalorder %s75, %s76
      %p88 = scmp.eq.s32.totalorder %s24, 1
      %p89 = por %p87, %p88
      %p91 = scmp.ne.s32.totalorder %s76, %s90
      %p92 = scmp.eq.s32.totalorder %s24, 0
      %p93 = por %p91, %p92
      %s95 = sadd.s32 %s94, 1
      %p98 = scmp.eq.s32.totalorder %s18, 1
      %p99 = scmp.ne.s32.totalorder %s94, %s96
      %p100 = scmp.eq.s32.totalorder %s18, 0
      %p101 = por %p99, %p100
      %p102 = scmp.ne.s32.totalorder %s94, %s96
      %p103 = scmp.eq.s32.totalorder %s23, 1
      %p104 = por %p102, %p103
      %p105 = scmp.ne.s32.totalorder %s96, %s97
      %p106 = scmp.eq.s32.totalorder %s23, 0
      %p107 = por %p105, %p106
      %p108 = scmp.ne.s32.totalorder %s96, %s97
      %p109 = scmp.eq.s32.totalorder %s24, 1
      %p110 = por %p108, %p109
      %p112 = scmp.ne.s32.totalorder %s97, %s111
      %p113 = scmp.eq.s32.totalorder %s24, 0
      %p114 = por %p112, %p113
      %s116 = sadd.s32 %s115, 1
      %p119 = scmp.eq.s32.totalorder %s18, 1
      %p120 = scmp.ne.s32.totalorder %s115, %s117
      %p121 = scmp.eq.s32.totalorder %s18, 0
      %p122 = por %p120, %p121
      %p123 = scmp.ne.s32.totalorder %s115, %s117
      %p124 = scmp.eq.s32.totalorder %s23, 1
      %p125 = por %p123, %p124
      %p126 = scmp.ne.s32.totalorder %s117, %s118
      %p127 = scmp.eq.s32.totalorder %s23, 0
      %p128 = por %p126, %p127
      %p129 = scmp.ne.s32.totalorder %s117, %s118
      %p130 = scmp.eq.s32.totalorder %s24, 1
      %p131 = por %p129, %p130
      %p133 = scmp.ne.s32.totalorder %s118, %s132
      %p134 = scmp.eq.s32.totalorder %s24, 0
      %p135 = por %p133, %p134
      %s136 = ssub.s32 %s18, %s25
      %p137 = scmp.eq.s32.totalorder %s136, 0
      %s139 = sadd.s32 %s138, 1
      %s140 = scalar_select %p137, %s138, %s139
      %p143 = pneg %p137
      %p144 = scmp.eq.s32.totalorder %s18, 1
      %p145 = por %p143, %p144
      %p146 = scmp.ne.s32.totalorder %s138, %s141
      %p147 = scmp.eq.s32.totalorder %s18, 0
      %p148 = por %p146, %p147
      %p149 = scmp.ne.s32.totalorder %s138, %s141
      %p150 = scmp.eq.s32.totalorder %s23, 1
      %p151 = por %p149, %p150
      %p152 = scmp.ne.s32.totalorder %s141, %s142
      %p153 = scmp.eq.s32.totalorder %s23, 0
      %p154 = por %p152, %p153
      %p155 = scmp.ne.s32.totalorder %s141, %s142
      %p156 = scmp.eq.s32.totalorder %s24, 1
      %p157 = por %p155, %p156
      %p159 = scmp.ne.s32.totalorder %s142, %s158
      %p160 = scmp.eq.s32.totalorder %s24, 0
      %p161 = por %p159, %p160
      %p162 = scmp.le.s32.totalorder 1, %s18
      %p163 = scmp.lt.s32.totalorder %s18, 3
      %p164 = pnand %p162, %p163
      %p165 = pneg %p164
      // Predicated region
      $region9: #{tpu_custom_call.1} parent=5 // pred_check
        _
      $region10: #{tpu_custom_call.1} parent=5 // pred_check_branch
        %167 = sbr.rel (%p164) target = $region12
      $region11: #{tpu_custom_call.1} parent=5 // pred_region
        %s168 = ssub.s32 %s18, 1
        // Predicated region
        $region13: #{tpu_custom_call.1} parent=11 // pred_check
          %p169 = pneg %p65
        $region14: #{tpu_custom_call.1} parent=11 // pred_check_branch
          %171 = sbr.rel (%p169) target = $region16
        $region15: #{tpu_custom_call.1} parent=11 // pred_region
          %173 = vsyncadd [#allocation8], 0
          %s174 = sshll.u32 %s1, 4
          %s175 = int_to_ptr.hbm [resolvable:$true] %s174
          %s176 = sshll.u32 [#allocation7], 4
          %s177 = int_to_ptr.vmem [resolvable:$true] %s176
          %182 = dma.hbm_to_vmem [thread:$0]  %s175, 3072, %s177, [#allocation8], 64, 64, 4
        $region16: #{tpu_custom_call.1} parent=11 // pred_fallthru
          _
        // Predicated region
        $region17: #{tpu_custom_call.1} parent=11 // pred_check
          %p183 = pneg %p86
        $region18: #{tpu_custom_call.1} parent=11 // pred_check_branch
          %185 = sbr.rel (%p183) target = $region20
        $region19: #{tpu_custom_call.1} parent=11 // pred_region
          _
        $region20: #{tpu_custom_call.1} parent=11 // pred_fallthru
          _
        // Predicated region
        $region21: #{tpu_custom_call.1} parent=11 // pred_check
          %p186 = pneg %p107
        $region22: #{tpu_custom_call.1} parent=11 // pred_check_branch
          %188 = sbr.rel (%p186) target = $region24
        $region23: #{tpu_custom_call.1} parent=11 // pred_region
          %190 = vsyncadd [#allocation8], 0
          %s191 = sshll.u32 %s3, 4
          %s192 = int_to_ptr.hbm [resolvable:$true] %s191
          %s193 = sshll.u32 [#allocation9], 4
          %s194 = int_to_ptr.vmem [resolvable:$true] %s193
          %199 = dma.hbm_to_vmem [thread:$0]  %s192, 3072, %s194, [#allocation8], 64, 64, 4
        $region24: #{tpu_custom_call.1} parent=11 // pred_fallthru
          _
        // Predicated region
        $region25: #{tpu_custom_call.1} parent=11 // pred_check
          %p200 = pneg %p128
        $region26: #{tpu_custom_call.1} parent=11 // pred_check_branch
          %202 = sbr.rel (%p200) target = $region28
        $region27: #{tpu_custom_call.1} parent=11 // pred_region
          _
        $region28: #{tpu_custom_call.1} parent=11 // pred_fallthru
          _
      $region12: #{tpu_custom_call.1} parent=5 // pred_fallthru
        _
      %p203 = scmp.lt.s32.totalorder %s18, 2
      // Predicated region
      $region29: #{tpu_custom_call.1} parent=5 // pred_check
        %p204 = pneg %p203
      $region30: #{tpu_custom_call.1} parent=5 // pred_check_branch
        %206 = sbr.rel (%p204) target = $region32
      $region31: #{tpu_custom_call.1} parent=5 // pred_region
        // Predicated region
        $region33: #{tpu_custom_call.1} parent=31 // pred_check
          %p207 = pneg %p38
        $region34: #{tpu_custom_call.1} parent=31 // pred_check_branch
          %209 = sbr.rel (%p207) target = $region36
        $region35: #{tpu_custom_call.1} parent=31 // pred_region
          %s210 = sand.u32 %s28, 1
          %s211 = scalar_lea.sflag [#allocation5], %s210
          %s212 = sand.u32 %s28, 1
          %s213 = smul.addr %s212, 16
          %s214 = scalar_lea.vmem [#allocation4], %s213
          %s215 = smul.u32 2, %s18
          %217 = vsyncadd %s211, 0
          %s218 = smul.addr %s215, 2
          %s219 = smul.addr %s218, 4
          %s220 = scalar_lea.hbm %s0, %s219
          %s221 = sshll.u32 %s220, 4
          %s222 = int_to_ptr.hbm [resolvable:$true] %s221
          %s223 = sshll.u32 %s214, 4
          %s224 = int_to_ptr.vmem [resolvable:$true] %s223
          %229 = dma.hbm_to_vmem [thread:$0]  %s222, 256, %s224, %s211, 64, 64, 4
        $region36: #{tpu_custom_call.1} parent=31 // pred_fallthru
          _
      $region32: #{tpu_custom_call.1} parent=5 // pred_fallthru
        _
      %p230 = scmp.le.s32.totalorder 1, %s18
      %p231 = scmp.lt.s32.totalorder %s18, 3
      %p232 = pnand %p230, %p231
      %p233 = pneg %p232
      // Predicated region
      $region37: #{tpu_custom_call.1} parent=5 // pred_check
        _
      $region38: #{tpu_custom_call.1} parent=5 // pred_check_branch
        %235 = sbr.rel (%p232) target = $region40
      $region39: #{tpu_custom_call.1} parent=5 // pred_region
        %s236 = ssub.s32 %s18, 1
        %s237 = sand.u32 %s31, 1
        %s238 = scalar_lea.sflag [#allocation5], %s237
        %s239 = sand.u32 %s31, 1
        %s240 = smul.addr %s239, 16
        %s241 = scalar_lea.vmem [#allocation4], %s240
        // Predicated region
        $region41: #{tpu_custom_call.1} parent=39 // pred_check
          %p242 = pneg %p44
        $region42: #{tpu_custom_call.1} parent=39 // pred_check_branch
          %244 = sbr.rel (%p242) target = $region44
        $region43: #{tpu_custom_call.1} parent=39 // pred_region
          %246 = dma.done %s238, 256
        $region44: #{tpu_custom_call.1} parent=39 // pred_fallthru
          _
        // Predicated region
        $region45: #{tpu_custom_call.1} parent=39 // pred_check
          %p247 = pneg %p65
        $region46: #{tpu_custom_call.1} parent=39 // pred_check_branch
          %249 = sbr.rel (%p247) target = $region48
        $region47: #{tpu_custom_call.1} parent=39 // pred_region
          %251 = dma.done [#allocation8], 3072
        $region48: #{tpu_custom_call.1} parent=39 // pred_fallthru
          _
        // Predicated region
        $region49: #{tpu_custom_call.1} parent=39 // pred_check
          %p252 = pneg %p107
        $region50: #{tpu_custom_call.1} parent=39 // pred_check_branch
          %254 = sbr.rel (%p252) target = $region52
        $region51: #{tpu_custom_call.1} parent=39 // pred_region
          %256 = dma.done [#allocation8], 3072
        $region52: #{tpu_custom_call.1} parent=39 // pred_fallthru
          _
        %s257 = sand.u32 %s31, 1
        %s258 = scalar_lea.sflag [#allocation5], %s257
        %s259 = sand.u32 %s31, 1
        %s260 = smul.addr %s259, 16
        %s261 = scalar_lea.vmem [#allocation4], %s260
        %p262 = pneg %p44
        %p263 = pneg %p41
        %p264 = pneg %p65
        %p265 = pneg %p62
        %p266 = pneg %p86
        %p267 = pneg %p83
        %p268 = pneg %p107
        %p269 = pneg %p104
        %p270 = pneg %p128
        %p271 = pneg %p125
        %p272 = pneg %p154
        %p273 = pneg %p151
        %s274 = sand.u32 %s141, 1
        %s275 = scalar_lea.sflag [#allocation6], %s274
        %s276 = sand.u32 %s141, 1
        %s277 = smul.addr %s276, 16
        %s278 = scalar_lea.vmem [#allocation10], %s277
        %s279 = smul.u32 2, %s23
        %s280 = smul.u32 2, %s23
        %vm282 = vcmask 1040384
        %vm283 = vsmask.f32 256
        %vm284 = vmand %vm282, %vm283
        %v285 = vld [vmem:[#allocation2] sm:$0x1]
        %v286 = vsel %vm284, 0, %v285
        %287 = vst [vmem:[#allocation2] sm:$0x1] %v286
        %vm288 = vsmask.f32 7938
        %vm289 = vmand %vm282, %vm288
        %v290 = vld [vmem:[#allocation2 + $0x8] sm:$0x1]
        %v291 = vsel %vm289, 0, %v290
        %292 = vst [vmem:[#allocation2 + $0x8] sm:$0x1] %v291
        %v293 = vld [vmem:[#allocation3] sm:$0x1]
        %v294 = vsel %vm284, 0, %v293
        %295 = vst [vmem:[#allocation3] sm:$0x1] %v294
        %v296 = vld [vmem:[#allocation3 + $0x8] sm:$0x1]
        %v297 = vsel %vm289, 0, %v296
        %298 = vst [vmem:[#allocation3 + $0x8] sm:$0x1] %v297
        %vm299 = vcmask 1041409
        %vm300 = vsmask.f32 1280
        %vm301 = vmand %vm299, %vm300
        %v302 = vld [vmem:[#allocation2 + $0x8] sm:$0x2]
        %v303 = vsel %vm301, 0, %v302
        %304 = vst [vmem:[#allocation2 + $0x8] sm:$0x2] %v303
        %vm305 = vsmask.f32 7942
        %vm306 = vmand %vm299, %vm305
        %v307 = vld [vmem:[#allocation2 + $0x10] sm:$0x2]
        %v308 = vsel %vm306, 0, %v307
        %309 = vst [vmem:[#allocation2 + $0x10] sm:$0x2] %v308
        %v310 = vld [vmem:[#allocation3 + $0x8] sm:$0x2]
        %v311 = vsel %vm301, 0, %v310
        %312 = vst [vmem:[#allocation3 + $0x8] sm:$0x2] %v311
        %v313 = vld [vmem:[#allocation3 + $0x10] sm:$0x2]
        %v314 = vsel %vm306, 0, %v313
        %315 = vst [vmem:[#allocation3 + $0x10] sm:$0x2] %v314
        %v316 = vld [vmem:[%s241] sm:$0xf]
        %v317 = vld [vmem:[%s241 + $0x4] sm:$0xf]
        %vm318 = vsmask.f32 4368
        %vm319 = vmor %vm283, %vm318
        %v321 = vshrl.u32 %v316, 16
        %v323 = vrot.slane %v321, 7
        %v324 = vshll.u32 %v316, 16
        %v326 = vor.u32 %v323, %v324
        %v327 = vrot.slane %v323, 4
        %v329 = vshrl.u32 %v317, 16
        %v331 = vrot.slane %v329, 7
        %v332 = vshll.u32 %v317, 16
        %v334 = vor.u32 %v331, %v332
        %v335 = vsel %vm319, %v327, %v334
        %v336 = vrot.slane %v331, 4
        %vm340 = vcmask 1043456
        %vm341 = vmand %vm340, %vm288
        %v342 = vld [vmem:[#allocation2] sm:$0xf]
        %v343 = vsel %vm341, %v326, %v342
        %344 = vst [vmem:[#allocation2] sm:$0xf] %v343
        %345 = vst [vmem:[#allocation2 + $0x4] sm:$0xf] %v335
        %v346 = vld [vmem:[#allocation2 + $0x8] sm:$0x1]
        %v347 = vsel %vm284, %v336, %v346
        %348 = vst [vmem:[#allocation2 + $0x8] sm:$0x1] %v347
        %s349 = scalar_lea.vmem %s241, 8 [#allocation4]
        %v350 = vld [vmem:[%s349] sm:$0xf]
        %v351 = vld [vmem:[%s349 + $0x4] sm:$0xf]
        %vm352 = vsmask.f32 5392
        %vm353 = vmor %vm300, %vm352
        %v355 = vshrl.u32 %v350, 16
        %v357 = vrot.slane %v355, 6
        %v358 = vshll.u32 %v350, 16
        %v360 = vrot.slane %v358, 7
        %v361 = vor.u32 %v357, %v360
        %v362 = vrot.slane %v361, 4
        %v364 = vshrl.u32 %v351, 16
        %v366 = vrot.slane %v364, 6
        %v367 = vshll.u32 %v351, 16
        %v369 = vrot.slane %v367, 7
        %v370 = vor.u32 %v366, %v369
        %v371 = vsel %vm353, %v362, %v370
        %v372 = vrot.slane %v370, 4
        %vm376 = vcmask 1043457
        %vm377 = vmand %vm376, %vm305
        %v378 = vld [vmem:[#allocation2 + $0x8] sm:$0xe]
        %v379 = vsel %vm377, %v361, %v378
        %380 = vst [vmem:[#allocation2 + $0x8] sm:$0xe] %v379
        %381 = vst [vmem:[#allocation2 + $0xc] sm:$0xf] %v371
        %vm382 = vcmask 1041408
        %vm383 = vmand %vm382, %vm300
        %v384 = vld [vmem:[#allocation2 + $0x10] sm:$0x3]
        %v385 = vsel %vm383, %v372, %v384
        %386 = vst [vmem:[#allocation2 + $0x10] sm:$0x3] %v385
        %v387 = vld [vmem:[#allocation2] sm:$0xf]
        %v388 = vld [vmem:[#allocation2 + $0x4] sm:$0xf]
        %v389 = vld [vmem:[#allocation2 + $0x8] sm:$0xf]
        %v390 = vld [vmem:[#allocation2 + $0xc] sm:$0xf]
        %v391 = vld [vmem:[#allocation2 + $0x10] sm:$0x3]
        %v392 = vld [vmem:[#allocation7] sm:$0xf]
        %v393 = vld [vmem:[#allocation7 + $0x4] sm:$0xf]
        %v394 = vld [vmem:[#allocation7 + $0x8] sm:$0xf]
        %v395 = vld [vmem:[#allocation7 + $0xc] sm:$0xf]
        %v396 = vld [vmem:[#allocation7 + $0x10] sm:$0xf]
        %v397 = vld [vmem:[#allocation7 + $0x14] sm:$0xf]
        %v398 = vld [vmem:[#allocation7 + $0x18] sm:$0xf]
        %v399 = vld [vmem:[#allocation7 + $0x1c] sm:$0xf]
        %v400 = vld [vmem:[#allocation7 + $0x20] sm:$0xf]
        %v401 = vld [vmem:[#allocation7 + $0x24] sm:$0xf]
        %v402 = vld [vmem:[#allocation7 + $0x28] sm:$0xf]
        %v403 = vld [vmem:[#allocation7 + $0x2c] sm:$0xf]
        %v404 = vld [vmem:[#allocation7 + $0x30] sm:$0xf]
        %v405 = vld [vmem:[#allocation7 + $0x34] sm:$0xf]
        %v406 = vld [vmem:[#allocation7 + $0x38] sm:$0xf]
        %v407 = vld [vmem:[#allocation7 + $0x3c] sm:$0xf]
        %v413 = vunpack.c.l.b16 %v387
        %v414 = vunpack.c.l.b16 %v388
        %v415 = vunpack.c.l.b16 %v389
        %v416 = vunpack.c.l.b16 %v390
        %v417 = vunpack.c.l.b16 %v391
        %v418 = vpack.c.b16 %v414, %v413
        %v419 = vpack.c.b16 %v416, %v415
        %v420 = vpack.c.b16 %v417, %v417
        %v440 = vunpack.c.l.b16 %v392
        %v441 = vunpack.c.l.b16 %v393
        %v442 = vunpack.c.l.b16 %v394
        %v443 = vunpack.c.l.b16 %v395
        %v444 = vunpack.c.l.b16 %v396
        %v445 = vunpack.c.l.b16 %v397
        %v446 = vunpack.c.l.b16 %v398
        %v447 = vunpack.c.l.b16 %v399
        %v448 = vunpack.c.l.b16 %v400
        %v449 = vunpack.c.l.b16 %v401
        %v450 = vunpack.c.l.b16 %v402
        %v451 = vunpack.c.l.b16 %v403
        %v452 = vunpack.c.l.b16 %v404
        %v453 = vunpack.c.l.b16 %v405
        %v454 = vunpack.c.l.b16 %v406
        %v455 = vunpack.c.l.b16 %v407
        %v456 = vpack.c.b16 %v441, %v440
        %v457 = vpack.c.b16 %v443, %v442
        %v458 = vpack.c.b16 %v445, %v444
        %v459 = vpack.c.b16 %v447, %v446
        %v460 = vpack.c.b16 %v449, %v448
        %v461 = vpack.c.b16 %v451, %v450
        %v462 = vpack.c.b16 %v453, %v452
        %v463 = vpack.c.b16 %v455, %v454
        %472 = vmatpush.bf16.msra.mxu0 %v463
        %473 = vmatpush.bf16.msra.mxu0 %v462
        %474 = vmatpush.bf16.msra.mxu0 %v461
        %475 = vmatpush.bf16.msra.mxu0 %v460
        %476 = vmatpush.bf16.msra.mxu0 %v459
        %477 = vmatpush.bf16.msra.mxu0 %v458
        %478 = vmatpush.bf16.msra.mxu0 %v457
        %479 = vmatpush.bf16.msra.mxu0 %v456
        %480 = vmatmul.bf16.gmra.mxu0 %v418
        %v481 = vpop.f32.mrf.mxu0
        %v482 = vadd.f32 0.0, %v481
        %v483 = vpop.f32.mrf.mxu0
        %v484 = vadd.f32 0.0, %v483
        %485 = vmatmul.bf16.gmra.mxu0 %v419
        %v486 = vpop.f32.mrf.mxu0
        %v487 = vadd.f32 0.0, %v486
        %v488 = vpop.f32.mrf.mxu0
        %v489 = vadd.f32 0.0, %v488
        %490 = vmatmul.bf16.gmra.mxu0 %v420
        %v491 = vpop.f32.mrf.mxu0
        %v492 = vadd.f32 0.0, %v491
        %v493 = vpop.f32.mrf.mxu0
        %494 = vdwg.mxu0
        %s495 = scalar_lea.vmem [#allocation7], 64
        %v496 = vld [vmem:[%s495] sm:$0xf]
        %v497 = vld [vmem:[%s495 + $0x4] sm:$0xf]
        %v498 = vld [vmem:[%s495 + $0x8] sm:$0xf]
        %v499 = vld [vmem:[%s495 + $0xc] sm:$0xf]
        %v500 = vld [vmem:[%s495 + $0x10] sm:$0xf]
        %v501 = vld [vmem:[%s495 + $0x14] sm:$0xf]
        %v502 = vld [vmem:[%s495 + $0x18] sm:$0xf]
        %v503 = vld [vmem:[%s495 + $0x1c] sm:$0xf]
        %v504 = vld [vmem:[%s495 + $0x20] sm:$0xf]
        %v505 = vld [vmem:[%s495 + $0x24] sm:$0xf]
        %v506 = vld [vmem:[%s495 + $0x28] sm:$0xf]
        %v507 = vld [vmem:[%s495 + $0x2c] sm:$0xf]
        %v508 = vld [vmem:[%s495 + $0x30] sm:$0xf]
        %v509 = vld [vmem:[%s495 + $0x34] sm:$0xf]
        %v510 = vld [vmem:[%s495 + $0x38] sm:$0xf]
        %v511 = vld [vmem:[%s495 + $0x3c] sm:$0xf]
        %v528 = vunpack.c.l.b16 %v496
        %v529 = vunpack.c.l.b16 %v497
        %v530 = vunpack.c.l.b16 %v498
        %v531 = vunpack.c.l.b16 %v499
        %v532 = vunpack.c.l.b16 %v500
        %v533 = vunpack.c.l.b16 %v501
        %v534 = vunpack.c.l.b16 %v502
        %v535 = vunpack.c.l.b16 %v503
        %v536 = vunpack.c.l.b16 %v504
        %v537 = vunpack.c.l.b16 %v505
        %v538 = vunpack.c.l.b16 %v506
        %v539 = vunpack.c.l.b16 %v507
        %v540 = vunpack.c.l.b16 %v508
        %v541 = vunpack.c.l.b16 %v509
        %v542 = vunpack.c.l.b16 %v510
        %v543 = vunpack.c.l.b16 %v511
        %v544 = vpack.c.b16 %v529, %v528
        %v545 = vpack.c.b16 %v531, %v530
        %v546 = vpack.c.b16 %v533, %v532
        %v547 = vpack.c.b16 %v535, %v534
        %v548 = vpack.c.b16 %v537, %v536
        %v549 = vpack.c.b16 %v539, %v538
        %v550 = vpack.c.b16 %v541, %v540
        %v551 = vpack.c.b16 %v543, %v542
        %560 = vmatpush.bf16.msra.mxu0 %v551
        %561 = vmatpush.bf16.msra.mxu0 %v550
        %562 = vmatpush.bf16.msra.mxu0 %v549
        %563 = vmatpush.bf16.msra.mxu0 %v548
        %564 = vmatpush.bf16.msra.mxu0 %v547
        %565 = vmatpush.bf16.msra.mxu0 %v546
        %566 = vmatpush.bf16.msra.mxu0 %v545
        %567 = vmatpush.bf16.msra.mxu0 %v544
        %568 = vmatmul.bf16.gmra.mxu0 %v418
        %v569 = vpop.f32.mrf.mxu0
        %v570 = vadd.f32 0.0, %v569
        %v571 = vpop.f32.mrf.mxu0
        %v572 = vadd.f32 0.0, %v571
        %573 = vmatmul.bf16.gmra.mxu0 %v419
        %v574 = vpop.f32.mrf.mxu0
        %v575 = vadd.f32 0.0, %v574
        %v576 = vpop.f32.mrf.mxu0
        %v577 = vadd.f32 0.0, %v576
        %578 = vmatmul.bf16.gmra.mxu0 %v420
        %v579 = vpop.f32.mrf.mxu0
        %v580 = vadd.f32 0.0, %v579
        %v581 = vpop.f32.mrf.mxu0
        %582 = vdwg.mxu0
        %s583 = scalar_lea.vmem [#allocation7], 128
        %v584 = vld [vmem:[%s583] sm:$0xf]
        %v585 = vld [vmem:[%s583 + $0x4] sm:$0xf]
        %v586 = vld [vmem:[%s583 + $0x8] sm:$0xf]
        %v587 = vld [vmem:[%s583 + $0xc] sm:$0xf]
        %v588 = vld [vmem:[%s583 + $0x10] sm:$0xf]
        %v589 = vld [vmem:[%s583 + $0x14] sm:$0xf]
        %v590 = vld [vmem:[%s583 + $0x18] sm:$0xf]
        %v591 = vld [vmem:[%s583 + $0x1c] sm:$0xf]
        %v592 = vld [vmem:[%s583 + $0x20] sm:$0xf]
        %v593 = vld [vmem:[%s583 + $0x24] sm:$0xf]
        %v594 = vld [vmem:[%s583 + $0x28] sm:$0xf]
        %v595 = vld [vmem:[%s583 + $0x2c] sm:$0xf]
        %v596 = vld [vmem:[%s583 + $0x30] sm:$0xf]
        %v597 = vld [vmem:[%s583 + $0x34] sm:$0xf]
        %v598 = vld [vmem:[%s583 + $0x38] sm:$0xf]
        %v599 = vld [vmem:[%s583 + $0x3c] sm:$0xf]
        %v616 = vunpack.c.l.b16 %v584
        %v617 = vunpack.c.l.b16 %v585
        %v618 = vunpack.c.l.b16 %v586
        %v619 = vunpack.c.l.b16 %v587
        %v620 = vunpack.c.l.b16 %v588
        %v621 = vunpack.c.l.b16 %v589
        %v622 = vunpack.c.l.b16 %v590
        %v623 = vunpack.c.l.b16 %v591
        %v624 = vunpack.c.l.b16 %v592
        %v625 = vunpack.c.l.b16 %v593
        %v626 = vunpack.c.l.b16 %v594
        %v627 = vunpack.c.l.b16 %v595
        %v628 = vunpack.c.l.b16 %v596
        %v629 = vunpack.c.l.b16 %v597
        %v630 = vunpack.c.l.b16 %v598
        %v631 = vunpack.c.l.b16 %v599
        %v632 = vpack.c.b16 %v617, %v616
        %v633 = vpack.c.b16 %v619, %v618
        %v634 = vpack.c.b16 %v621, %v620
        %v635 = vpack.c.b16 %v623, %v622
        %v636 = vpack.c.b16 %v625, %v624
        %v637 = vpack.c.b16 %v627, %v626
        %v638 = vpack.c.b16 %v629, %v628
        %v639 = vpack.c.b16 %v631, %v630
        %648 = vmatpush.bf16.msra.mxu0 %v639
        %649 = vmatpush.bf16.msra.mxu0 %v638
        %650 = vmatpush.bf16.msra.mxu0 %v637
        %651 = vmatpush.bf16.msra.mxu0 %v636
        %652 = vmatpush.bf16.msra.mxu0 %v635
        %653 = vmatpush.bf16.msra.mxu0 %v634
        %654 = vmatpush.bf16.msra.mxu0 %v633
        %655 = vmatpush.bf16.msra.mxu0 %v632
        %656 = vmatmul.bf16.gmra.mxu0 %v418
        %v657 = vpop.f32.mrf.mxu0
        %v658 = vadd.f32 0.0, %v657
        %v659 = vpop.f32.mrf.mxu0
        %v660 = vadd.f32 0.0, %v659
        %661 = vmatmul.bf16.gmra.mxu0 %v419
        %v662 = vpop.f32.mrf.mxu0
        %v663 = vadd.f32 0.0, %v662
        %v664 = vpop.f32.mrf.mxu0
        %v665 = vadd.f32 0.0, %v664
        %666 = vmatmul.bf16.gmra.mxu0 %v420
        %v667 = vpop.f32.mrf.mxu0
        %v668 = vadd.f32 0.0, %v667
        %v669 = vpop.f32.mrf.mxu0
        %670 = vdwg.mxu0
        %vm674 = vcmask 1046528
        %v675 = vrot.slane %v570, 1
        %v676 = vrot.slane %v572, 1
        %v677 = vsel %vm674, %v675, %v676
        %v678 = vrot.slane %v575, 1
        %v679 = vsel %vm674, %v676, %v678
        %v682 = vadd.f32 %v482, %v677
        %v683 = vadd.f32 %v484, %v679
        %vm687 = vcmask 1045504
        %v688 = vrot.slane %v658, 2
        %v689 = vrot.slane %v660, 2
        %v690 = vsel %vm687, %v688, %v689
        %v691 = vrot.slane %v663, 2
        %v692 = vsel %vm687, %v689, %v691
        %v695 = vadd.f32 %v682, %v690
        %v696 = vadd.f32 %v683, %v692
        %v697 = vld [vmem:[%s2] sm:$0x1]
        %v699 = vperm.slane %v697, 0
        %v701 = vadd.f32 %v695, %v699
        %v702 = vadd.f32 %v696, %v699
        %v703 = vmax.f32 %v701, 0.0
        %v704 = vmax.f32 %v702, 0.0
        %v705 = vpack.c.bf16 %v703, %v703
        %v706 = vpack.c.bf16 %v704, %v704
        %v708 = vshrl.u32 %v705, 16
        %v710 = vrot.slane %v708, 7
        %v711 = vshll.u32 %v705, 16
        %v713 = vor.u32 %v710, %v711
        %v714 = vrot.slane %v710, 4
        %v716 = vshrl.u32 %v706, 16
        %v718 = vrot.slane %v716, 7
        %v719 = vshll.u32 %v706, 16
        %v721 = vor.u32 %v718, %v719
        %v722 = vsel %vm319, %v714, %v721
        %v723 = vrot.slane %v718, 4
        %v727 = vld [vmem:[#allocation3] sm:$0xf]
        %v728 = vsel %vm341, %v713, %v727
        %729 = vst [vmem:[#allocation3] sm:$0xf] %v728
        %730 = vst [vmem:[#allocation3 + $0x4] sm:$0xf] %v722
        %v731 = vld [vmem:[#allocation3 + $0x8] sm:$0x1]
        %v732 = vsel %vm284, %v723, %v731
        %733 = vst [vmem:[#allocation3 + $0x8] sm:$0x1] %v732
        %v736 = vrot.slane %v577, 1
        %v737 = vsel %vm674, %v678, %v736
        %v738 = vrot.slane %v580, 1
        %v739 = vsel %vm674, %v736, %v738
        %v743 = vadd.f32 %v487, %v737
        %v744 = vadd.f32 %v489, %v739
        %v745 = vadd.f32 %v492, %v738
        %v748 = vrot.slane %v665, 2
        %v749 = vsel %vm687, %v691, %v748
        %v750 = vrot.slane %v668, 2
        %v751 = vsel %vm687, %v748, %v750
        %v755 = vadd.f32 %v743, %v749
        %v756 = vadd.f32 %v744, %v751
        %v757 = vadd.f32 %v745, %v750
        %v758 = vld [vmem:[%s2] sm:$0x1]
        %v760 = vperm.slane %v758, 0
        %v762 = vadd.f32 %v755, %v760
        %v763 = vadd.f32 %v756, %v760
        %v764 = vadd.f32 %v757, %v760
        %v765 = vmax.f32 %v762, 0.0
        %v766 = vmax.f32 %v763, 0.0
        %v767 = vmax.f32 %v764, 0.0
        %v768 = vpack.c.bf16 %v765, %v765
        %v769 = vpack.c.bf16 %v766, %v766
        %v770 = vpack.c.bf16 %v767, %v767
        %v772 = vshrl.u32 %v768, 16
        %v774 = vrot.slane %v772, 7
        %v775 = vshll.u32 %v768, 16
        %v777 = vor.u32 %v774, %v775
        %v778 = vrot.slane %v774, 4
        %v780 = vshrl.u32 %v769, 16
        %v782 = vrot.slane %v780, 7
        %v783 = vshll.u32 %v769, 16
        %v785 = vor.u32 %v782, %v783
        %v786 = vsel %vm319, %v778, %v785
        %v787 = vrot.slane %v782, 4
        %v789 = vshrl.u32 %v770, 16
        %v791 = vrot.slane %v789, 7
        %v792 = vshll.u32 %v770, 16
        %v794 = vor.u32 %v791, %v792
        %v795 = vsel %vm319, %v787, %v794
        %v799 = vld [vmem:[#allocation3 + $0x8] sm:$0xe]
        %v800 = vsel %vm377, %v777, %v799
        %801 = vst [vmem:[#allocation3 + $0x8] sm:$0xe] %v800
        %802 = vst [vmem:[#allocation3 + $0xc] sm:$0xf] %v786
        %v803 = vld [vmem:[#allocation3 + $0x10] sm:$0x3]
        %v804 = vsel %vm383, %v795, %v803
        %805 = vst [vmem:[#allocation3 + $0x10] sm:$0x3] %v804
        %v806 = vld [vmem:[#allocation3] sm:$0xf]
        %v807 = vld [vmem:[#allocation3 + $0x4] sm:$0xf]
        %v808 = vld [vmem:[#allocation3 + $0x8] sm:$0xf]
        %v809 = vld [vmem:[#allocation3 + $0xc] sm:$0xf]
        %v810 = vld [vmem:[#allocation3 + $0x10] sm:$0x3]
        %v811 = vld [vmem:[#allocation9] sm:$0xf]
        %v812 = vld [vmem:[#allocation9 + $0x4] sm:$0xf]
        %v813 = vld [vmem:[#allocation9 + $0x8] sm:$0xf]
        %v814 = vld [vmem:[#allocation9 + $0xc] sm:$0xf]
        %v815 = vld [vmem:[#allocation9 + $0x10] sm:$0xf]
        %v816 = vld [vmem:[#allocation9 + $0x14] sm:$0xf]
        %v817 = vld [vmem:[#allocation9 + $0x18] sm:$0xf]
        %v818 = vld [vmem:[#allocation9 + $0x1c] sm:$0xf]
        %v819 = vld [vmem:[#allocation9 + $0x20] sm:$0xf]
        %v820 = vld [vmem:[#allocation9 + $0x24] sm:$0xf]
        %v821 = vld [vmem:[#allocation9 + $0x28] sm:$0xf]
        %v822 = vld [vmem:[#allocation9 + $0x2c] sm:$0xf]
        %v823 = vld [vmem:[#allocation9 + $0x30] sm:$0xf]
        %v824 = vld [vmem:[#allocation9 + $0x34] sm:$0xf]
        %v825 = vld [vmem:[#allocation9 + $0x38] sm:$0xf]
        %v826 = vld [vmem:[#allocation9 + $0x3c] sm:$0xf]
        %v832 = vunpack.c.l.b16 %v806
        %v833 = vunpack.c.l.b16 %v807
        %v834 = vunpack.c.l.b16 %v808
        %v835 = vunpack.c.l.b16 %v809
        %v836 = vunpack.c.l.b16 %v810
        %v837 = vpack.c.b16 %v833, %v832
        %v838 = vpack.c.b16 %v835, %v834
        %v839 = vpack.c.b16 %v836, %v836
        %v859 = vunpack.c.l.b16 %v811
        %v860 = vunpack.c.l.b16 %v812
        %v861 = vunpack.c.l.b16 %v813
        %v862 = vunpack.c.l.b16 %v814
        %v863 = vunpack.c.l.b16 %v815
        %v864 = vunpack.c.l.b16 %v816
        %v865 = vunpack.c.l.b16 %v817
        %v866 = vunpack.c.l.b16 %v818
        %v867 = vunpack.c.l.b16 %v819
        %v868 = vunpack.c.l.b16 %v820
        %v869 = vunpack.c.l.b16 %v821
        %v870 = vunpack.c.l.b16 %v822
        %v871 = vunpack.c.l.b16 %v823
        %v872 = vunpack.c.l.b16 %v824
        %v873 = vunpack.c.l.b16 %v825
        %v874 = vunpack.c.l.b16 %v826
        %v875 = vpack.c.b16 %v860, %v859
        %v876 = vpack.c.b16 %v862, %v861
        %v877 = vpack.c.b16 %v864, %v863
        %v878 = vpack.c.b16 %v866, %v865
        %v879 = vpack.c.b16 %v868, %v867
        %v880 = vpack.c.b16 %v870, %v869
        %v881 = vpack.c.b16 %v872, %v871
        %v882 = vpack.c.b16 %v874, %v873
        %891 = vmatpush.bf16.msra.mxu0 %v882
        %892 = vmatpush.bf16.msra.mxu0 %v881
        %893 = vmatpush.bf16.msra.mxu0 %v880
        %894 = vmatpush.bf16.msra.mxu0 %v879
        %895 = vmatpush.bf16.msra.mxu0 %v878
        %896 = vmatpush.bf16.msra.mxu0 %v877
        %897 = vmatpush.bf16.msra.mxu0 %v876
        %898 = vmatpush.bf16.msra.mxu0 %v875
        %899 = vmatmul.bf16.gmra.mxu0 %v837
        %v900 = vpop.f32.mrf.mxu0
        %v901 = vadd.f32 0.0, %v900
        %v902 = vpop.f32.mrf.mxu0
        %v903 = vadd.f32 0.0, %v902
        %904 = vmatmul.bf16.gmra.mxu0 %v838
        %v905 = vpop.f32.mrf.mxu0
        %v906 = vadd.f32 0.0, %v905
        %v907 = vpop.f32.mrf.mxu0
        %v908 = vadd.f32 0.0, %v907
        %909 = vmatmul.bf16.gmra.mxu0 %v839
        %v910 = vpop.f32.mrf.mxu0
        %v911 = vadd.f32 0.0, %v910
        %v912 = vpop.f32.mrf.mxu0
        %913 = vdwg.mxu0
        %s914 = scalar_lea.vmem [#allocation9], 64
        %v915 = vld [vmem:[%s914] sm:$0xf]
        %v916 = vld [vmem:[%s914 + $0x4] sm:$0xf]
        %v917 = vld [vmem:[%s914 + $0x8] sm:$0xf]
        %v918 = vld [vmem:[%s914 + $0xc] sm:$0xf]
        %v919 = vld [vmem:[%s914 + $0x10] sm:$0xf]
        %v920 = vld [vmem:[%s914 + $0x14] sm:$0xf]
        %v921 = vld [vmem:[%s914 + $0x18] sm:$0xf]
        %v922 = vld [vmem:[%s914 + $0x1c] sm:$0xf]
        %v923 = vld [vmem:[%s914 + $0x20] sm:$0xf]
        %v924 = vld [vmem:[%s914 + $0x24] sm:$0xf]
        %v925 = vld [vmem:[%s914 + $0x28] sm:$0xf]
        %v926 = vld [vmem:[%s914 + $0x2c] sm:$0xf]
        %v927 = vld [vmem:[%s914 + $0x30] sm:$0xf]
        %v928 = vld [vmem:[%s914 + $0x34] sm:$0xf]
        %v929 = vld [vmem:[%s914 + $0x38] sm:$0xf]
        %v930 = vld [vmem:[%s914 + $0x3c] sm:$0xf]
        %v947 = vunpack.c.l.b16 %v915
        %v948 = vunpack.c.l.b16 %v916
        %v949 = vunpack.c.l.b16 %v917
        %v950 = vunpack.c.l.b16 %v918
        %v951 = vunpack.c.l.b16 %v919
        %v952 = vunpack.c.l.b16 %v920
        %v953 = vunpack.c.l.b16 %v921
        %v954 = vunpack.c.l.b16 %v922
        %v955 = vunpack.c.l.b16 %v923
        %v956 = vunpack.c.l.b16 %v924
        %v957 = vunpack.c.l.b16 %v925
        %v958 = vunpack.c.l.b16 %v926
        %v959 = vunpack.c.l.b16 %v927
        %v960 = vunpack.c.l.b16 %v928
        %v961 = vunpack.c.l.b16 %v929
        %v962 = vunpack.c.l.b16 %v930
        %v963 = vpack.c.b16 %v948, %v947
        %v964 = vpack.c.b16 %v950, %v949
        %v965 = vpack.c.b16 %v952, %v951
        %v966 = vpack.c.b16 %v954, %v953
        %v967 = vpack.c.b16 %v956, %v955
        %v968 = vpack.c.b16 %v958, %v957
        %v969 = vpack.c.b16 %v960, %v959
        %v970 = vpack.c.b16 %v962, %v961
        %979 = vmatpush.bf16.msra.mxu0 %v970
        %980 = vmatpush.bf16.msra.mxu0 %v969
        %981 = vmatpush.bf16.msra.mxu0 %v968
        %982 = vmatpush.bf16.msra.mxu0 %v967
        %983 = vmatpush.bf16.msra.mxu0 %v966
        %984 = vmatpush.bf16.msra.mxu0 %v965
        %985 = vmatpush.bf16.msra.mxu0 %v964
        %986 = vmatpush.bf16.msra.mxu0 %v963
        %987 = vmatmul.bf16.gmra.mxu0 %v837
        %v988 = vpop.f32.mrf.mxu0
        %v989 = vadd.f32 0.0, %v988
        %v990 = vpop.f32.mrf.mxu0
        %v991 = vadd.f32 0.0, %v990
        %992 = vmatmul.bf16.gmra.mxu0 %v838
        %v993 = vpop.f32.mrf.mxu0
        %v994 = vadd.f32 0.0, %v993
        %v995 = vpop.f32.mrf.mxu0
        %v996 = vadd.f32 0.0, %v995
        %997 = vmatmul.bf16.gmra.mxu0 %v839
        %v998 = vpop.f32.mrf.mxu0
        %v999 = vadd.f32 0.0, %v998
        %v1000 = vpop.f32.mrf.mxu0
        %1001 = vdwg.mxu0
        %s1002 = scalar_lea.vmem [#allocation9], 128
        %v1003 = vld [vmem:[%s1002] sm:$0xf]
        %v1004 = vld [vmem:[%s1002 + $0x4] sm:$0xf]
        %v1005 = vld [vmem:[%s1002 + $0x8] sm:$0xf]
        %v1006 = vld [vmem:[%s1002 + $0xc] sm:$0xf]
        %v1007 = vld [vmem:[%s1002 + $0x10] sm:$0xf]
        %v1008 = vld [vmem:[%s1002 + $0x14] sm:$0xf]
        %v1009 = vld [vmem:[%s1002 + $0x18] sm:$0xf]
        %v1010 = vld [vmem:[%s1002 + $0x1c] sm:$0xf]
        %v1011 = vld [vmem:[%s1002 + $0x20] sm:$0xf]
        %v1012 = vld [vmem:[%s1002 + $0x24] sm:$0xf]
        %v1013 = vld [vmem:[%s1002 + $0x28] sm:$0xf]
        %v1014 = vld [vmem:[%s1002 + $0x2c] sm:$0xf]
        %v1015 = vld [vmem:[%s1002 + $0x30] sm:$0xf]
        %v1016 = vld [vmem:[%s1002 + $0x34] sm:$0xf]
        %v1017 = vld [vmem:[%s1002 + $0x38] sm:$0xf]
        %v1018 = vld [vmem:[%s1002 + $0x3c] sm:$0xf]
        %v1035 = vunpack.c.l.b16 %v1003
        %v1036 = vunpack.c.l.b16 %v1004
        %v1037 = vunpack.c.l.b16 %v1005
        %v1038 = vunpack.c.l.b16 %v1006
        %v1039 = vunpack.c.l.b16 %v1007
        %v1040 = vunpack.c.l.b16 %v1008
        %v1041 = vunpack.c.l.b16 %v1009
        %v1042 = vunpack.c.l.b16 %v1010
        %v1043 = vunpack.c.l.b16 %v1011
        %v1044 = vunpack.c.l.b16 %v1012
        %v1045 = vunpack.c.l.b16 %v1013
        %v1046 = vunpack.c.l.b16 %v1014
        %v1047 = vunpack.c.l.b16 %v1015
        %v1048 = vunpack.c.l.b16 %v1016
        %v1049 = vunpack.c.l.b16 %v1017
        %v1050 = vunpack.c.l.b16 %v1018
        %v1051 = vpack.c.b16 %v1036, %v1035
        %v1052 = vpack.c.b16 %v1038, %v1037
        %v1053 = vpack.c.b16 %v1040, %v1039
        %v1054 = vpack.c.b16 %v1042, %v1041
        %v1055 = vpack.c.b16 %v1044, %v1043
        %v1056 = vpack.c.b16 %v1046, %v1045
        %v1057 = vpack.c.b16 %v1048, %v1047
        %v1058 = vpack.c.b16 %v1050, %v1049
        %1067 = vmatpush.bf16.msra.mxu0 %v1058
        %1068 = vmatpush.bf16.msra.mxu0 %v1057
        %1069 = vmatpush.bf16.msra.mxu0 %v1056
        %1070 = vmatpush.bf16.msra.mxu0 %v1055
        %1071 = vmatpush.bf16.msra.mxu0 %v1054
        %1072 = vmatpush.bf16.msra.mxu0 %v1053
        %1073 = vmatpush.bf16.msra.mxu0 %v1052
        %1074 = vmatpush.bf16.msra.mxu0 %v1051
        %1075 = vmatmul.bf16.gmra.mxu0 %v837
        %v1076 = vpop.f32.mrf.mxu0
        %v1077 = vadd.f32 0.0, %v1076
        %v1078 = vpop.f32.mrf.mxu0
        %v1079 = vadd.f32 0.0, %v1078
        %1080 = vmatmul.bf16.gmra.mxu0 %v838
        %v1081 = vpop.f32.mrf.mxu0
        %v1082 = vadd.f32 0.0, %v1081
        %v1083 = vpop.f32.mrf.mxu0
        %v1084 = vadd.f32 0.0, %v1083
        %1085 = vmatmul.bf16.gmra.mxu0 %v839
        %v1086 = vpop.f32.mrf.mxu0
        %v1087 = vadd.f32 0.0, %v1086
        %v1088 = vpop.f32.mrf.mxu0
        %1089 = vdwg.mxu0
        %v1093 = vrot.slane %v989, 1
        %v1094 = vrot.slane %v991, 1
        %v1095 = vsel %vm674, %v1093, %v1094
        %v1096 = vrot.slane %v994, 1
        %v1097 = vsel %vm674, %v1094, %v1096
        %v1100 = vadd.f32 %v901, %v1095
        %v1101 = vadd.f32 %v903, %v1097
        %v1105 = vrot.slane %v1077, 2
        %v1106 = vrot.slane %v1079, 2
        %v1107 = vsel %vm687, %v1105, %v1106
        %v1108 = vrot.slane %v1082, 2
        %v1109 = vsel %vm687, %v1106, %v1108
        %v1112 = vadd.f32 %v1100, %v1107
        %v1113 = vadd.f32 %v1101, %v1109
        %v1114 = vld [vmem:[%s4] sm:$0x1]
        %v1116 = vperm.slane %v1114, 0
        %v1118 = vadd.f32 %v1112, %v1116
        %v1119 = vadd.f32 %v1113, %v1116
        %v1120 = vld [vmem:[%s241] sm:$0xf]
        %v1121 = vld [vmem:[%s241 + $0x4] sm:$0xf]
        %v1122 = vunpack.c.l.bf16 %v1120
        %v1123 = vunpack.c.l.bf16 %v1121
        %v1124 = vadd.f32 %v1118, %v1122
        %v1125 = vadd.f32 %v1119, %v1123
        %v1126 = vmax.f32 %v1124, 0.0
        %v1127 = vmax.f32 %v1125, 0.0
        %v1128 = vpack.c.bf16 %v1126, %v1126
        %v1129 = vpack.c.bf16 %v1127, %v1127
        %1130 = vst [vmem:[%s278] sm:$0xf] %v1128
        %1131 = vst [vmem:[%s278 + $0x4] sm:$0xf] %v1129
        %v1134 = vrot.slane %v996, 1
        %v1135 = vsel %vm674, %v1096, %v1134
        %v1136 = vrot.slane %v999, 1
        %v1137 = vsel %vm674, %v1134, %v1136
        %v1141 = vadd.f32 %v906, %v1135
        %v1142 = vadd.f32 %v908, %v1137
        %v1143 = vadd.f32 %v911, %v1136
        %v1146 = vrot.slane %v1084, 2
        %v1147 = vsel %vm687, %v1108, %v1146
        %v1148 = vrot.slane %v1087, 2
        %v1149 = vsel %vm687, %v1146, %v1148
        %v1153 = vadd.f32 %v1141, %v1147
        %v1154 = vadd.f32 %v1142, %v1149
        %v1155 = vadd.f32 %v1143, %v1148
        %v1156 = vld [vmem:[%s4] sm:$0x1]
        %v1158 = vperm.slane %v1156, 0
        %v1160 = vadd.f32 %v1153, %v1158
        %v1161 = vadd.f32 %v1154, %v1158
        %v1162 = vadd.f32 %v1155, %v1158
        %v1163 = vld [vmem:[%s349] sm:$0xf]
        %v1164 = vld [vmem:[%s349 + $0x4] sm:$0xf]
        %v1165 = vunpack.c.l.bf16 %v1163
        %v1166 = vunpack.c.l.bf16 %v1164
        %vm1169 = vcmask 1041408
        %v1170 = vrot.slane %v1165, 6
        %v1171 = vrot.slane %v1166, 6
        %v1172 = vsel %vm1169, %v1170, %v1171
        %v1176 = vadd.f32 %v1160, %v1170
        %v1177 = vadd.f32 %v1161, %v1172
        %v1178 = vadd.f32 %v1162, %v1171
        %v1179 = vmax.f32 %v1176, 0.0
        %v1180 = vmax.f32 %v1177, 0.0
        %v1181 = vmax.f32 %v1178, 0.0
        %v1182 = vpack.c.bf16 %v1179, %v1179
        %v1183 = vpack.c.bf16 %v1180, %v1180
        %v1184 = vpack.c.bf16 %v1181, %v1181
        %vm1188 = vcmask 1042432
        %vm1189 = vcmask 1046532
        %vm1190 = vmor %vm1188, %vm1189
        %v1191 = vrot.slane %v1182, 5
        %v1192 = vrot.slane %v1191, 4
        %v1193 = vrot.slane %v1183, 5
        %v1194 = vsel %vm1190, %v1192, %v1193
        %v1195 = vrot.slane %v1193, 4
        %v1196 = vrot.slane %v1184, 5
        %v1197 = vsel %vm1190, %v1195, %v1196
        %s1200 = scalar_lea.vmem %s278, 8 [#allocation10]
        %1201 = vst [vmem:[%s1200] sm:$0xf] %v1194
        %1202 = vst [vmem:[%s1200 + $0x4] sm:$0xf] %v1197
        %s1203 = sand.u32 %s141, 1
        %s1204 = scalar_lea.sflag [#allocation6], %s1203
        %s1205 = sand.u32 %s141, 1
        %s1206 = smul.addr %s1205, 16
        %s1207 = scalar_lea.vmem [#allocation10], %s1206
        // Predicated region
        $region53: #{tpu_custom_call.1} parent=39 // pred_check
          %p1208 = pneg %p151
        $region54: #{tpu_custom_call.1} parent=39 // pred_check_branch
          %1210 = sbr.rel (%p1208) target = $region56
        $region55: #{tpu_custom_call.1} parent=39 // pred_region
          %s1211 = smul.u32 2, %s23
          %1213 = vsyncadd %s1204, 0
          %s1214 = smul.addr %s1211, 2
          %s1215 = smul.addr %s1214, 4
          %s1216 = scalar_lea.hbm %s5, %s1215
          %s1217 = sshll.u32 %s1207, 4
          %s1218 = int_to_ptr.vmem [resolvable:$true] %s1217
          %s1219 = sshll.u32 %s1216, 4
          %s1220 = int_to_ptr.hbm [resolvable:$true] %s1219
          %1225 = dma.vmem_to_hbm [thread:$0]  %s1218, 256, %s1220, %s1204, 64, 64, 4
        $region56: #{tpu_custom_call.1} parent=39 // pred_fallthru
          _
      $region40: #{tpu_custom_call.1} parent=5 // pred_fallthru
        _
      %p1226 = scmp.le.s32.totalorder 2, %s18
      // Predicated region
      $region57: #{tpu_custom_call.1} parent=5 // pred_check
        %p1227 = pneg %p1226
      $region58: #{tpu_custom_call.1} parent=5 // pred_check_branch
        %1229 = sbr.rel (%p1227) target = $region60
      $region59: #{tpu_custom_call.1} parent=5 // pred_region
        %s1230 = ssub.s32 %s18, 2
        // Predicated region
        $region61: #{tpu_custom_call.1} parent=59 // pred_check
          %p1231 = pneg %p157
        $region62: #{tpu_custom_call.1} parent=59 // pred_check_branch
          %1233 = sbr.rel (%p1231) target = $region64
        $region63: #{tpu_custom_call.1} parent=59 // pred_region
          %s1234 = sand.u32 %s142, 1
          %s1235 = scalar_lea.sflag [#allocation6], %s1234
          %s1236 = sand.u32 %s142, 1
          %s1237 = smul.addr %s1236, 16
          %s1238 = scalar_lea.vmem [#allocation10], %s1237
          %1240 = dma.done %s1235, 256
        $region64: #{tpu_custom_call.1} parent=59 // pred_fallthru
          _
      $region60: #{tpu_custom_call.1} parent=5 // pred_fallthru
        _
    $region6: #{tpu_custom_call.1} parent=1 // loop_footer
      %s22 = sadd.s32 1, %s18
    $region7: #{tpu_custom_call.1} parent=1 // loop_footer_branch
      %17 = sbr.rel target = $region3
    $region8: #{tpu_custom_call.1} parent=1 // loop_exit
      _
    %1241 = vsyncpa [#allocation5], 1
    %s1242 = scalar_lea.sflag [#allocation5], 1
    %1243 = vsyncpa %s1242, 1
    %1244 = vsyncpa [#allocation8], 1
    %1245 = vsyncpa [#allocation6], 1
    %s1246 = scalar_lea.sflag [#allocation6], 1
    %1247 = vsyncpa %s1246, 1

</llo_original>
